<compile_context>
chip_gen: v7x
topology: tpu7x:2x2x1
jax: 0.10.0
libtpu: 0.0.40
codegen_flags: <defaults>
</compile_context>

<pallas_src>
import functools
from typing import NamedTuple, Optional

import jax
import jax.numpy as jnp
from jax.experimental import pallas as pl
from jax.experimental.pallas import tpu as pltpu


def _round_up(x: int, m: int) -> int:
    return ((x + m - 1) // m) * m


def _vmem_budget_bytes() -> int:
    """Generation-aware VMEM budget (~70% of physical, capped at 96 MiB)."""
    try:
        cap = int(pltpu.get_tpu_info().vmem_capacity_bytes)
    except Exception:
        cap = 64 * 1024 * 1024  # conservative (v7x-like) fallback
    return min(int(cap * 0.7), 96 * 1024 * 1024)


def _pick_tile(dim_p: int, cap: int, unit: int, prefer_split: bool = False) -> int:
    """Largest multiple of `unit` that divides dim_p and is <= cap.
    With prefer_split, prefer a tile that leaves >= 2 blocks (keeps both v7x TCs busy)."""
    candidates = [d for d in range(unit, dim_p + 1, unit)
                  if dim_p % d == 0 and d <= max(cap, unit)]
    if not candidates:
        candidates = [unit]
    if prefer_split:
        split = [d for d in candidates if dim_p // d >= 2]
        if split:
            return max(split)
    return max(candidates)


class _Plan(NamedTuple):
    tm: int
    tn: int
    tk: int
    Mp: int
    Np: int
    Kp: int
    vmem_limit: int
    use_scratch: bool


def _make_plan(M: int, N: int, K: int, x_bytes: int, w_bytes: int, o_bytes: int,
               tm: Optional[int] = None, tn: Optional[int] = None,
               tk: Optional[int] = None) -> _Plan:
    budget = _vmem_budget_bytes()
    big_vmem = budget >= 64 * 1024 * 1024          # v5e/v6e (128 MiB) vs v7x (64 MiB)
    tn_cap = tn if tn is not None else (1024 if big_vmem else 512)
    tk_cap = tk if tk is not None else (2048 if big_vmem else 1024)
    tm_cap = tm if tm is not None else 512

    Np = _round_up(N, 128)
    Kp = _round_up(K, 128)
    tn_ = _pick_tile(Np, tn_cap, 128, prefer_split=(Np >= 256))
    tk_ = _pick_tile(Kp, tk_cap, 128)
    tm_ = min(_round_up(M, 8), _round_up(tm_cap, 8))
    Mp = _round_up(M, tm_)

    use_scratch = o_bytes != 4  # low-precision output -> separate f32 accumulator

    # Per-step VMEM: in/out tiles are double-buffered (x2 counted exactly once),
    # the accumulator (if any) is a single resident buffer.
    step_bytes = (2 * (tm_ * tk_ * x_bytes + tk_ * tn_ * w_bytes
                       + tn_ * 4 + tm_ * tn_ * o_bytes)
                  + (tm_ * tn_ * 4 if use_scratch else 0))
    vmem_limit = int(min(budget, max(16 * 1024 * 1024, step_bytes + (4 << 20))))
    return _Plan(tm_, tn_, tk_, Mp, Np, Kp, vmem_limit, use_scratch)


def prepare_mlp_params(weight, bias, plan: _Plan, weight_dtype=None):
    """One-time parameter prep (cache the result outside the hot path):
    pad PyTorch (out, in) weight to (Np, Kp), transpose to (Kp, Np), pad bias."""
    N, K = weight.shape
    w = weight if weight_dtype is None else weight.astype(weight_dtype)
    if plan.Np != N or plan.Kp != K:
        w = jnp.pad(w, ((0, plan.Np - N), (0, plan.Kp - K)))
    w_t = w.T  # (Kp, Np): standard contraction, no in-kernel transpose.
    b = bias.astype(jnp.float32)
    if plan.Np != N:
        b = jnp.pad(b, (0, plan.Np - N))
    return w_t, b.reshape(1, plan.Np)


def _mlp_kernel_inplace(x_ref, w_ref, b_ref, o_ref, *, activation: str):
    """f32 output: accumulate directly into the VMEM-resident output block."""
    k = pl.program_id(2)

    @pl.when(k == 0)
    def _init():
        o_ref[...] = jnp.zeros_like(o_ref)

    lhs = x_ref[...]
    rhs = w_ref[...]
    if lhs.dtype != rhs.dtype:        # bf16 weight streaming: feed MXU in bf16
        lhs = lhs.astype(rhs.dtype)
    o_ref[...] += jnp.dot(lhs, rhs, preferred_element_type=jnp.float32)

    @pl.when(k == pl.num_programs(2) - 1)
    def _finalize():
        y = o_ref[...] + b_ref[...]
        y = jnp.maximum(y, 0.0) if activation == "relu" else jnp.tanh(y)
        o_ref[...] = y


def _mlp_kernel_scratch(x_ref, w_ref, b_ref, o_ref, acc_ref, *, activation: str):
    """Low-precision output: accumulate in an f32 scratch, cast on finalize."""
    k = pl.program_id(2)

    @pl.when(k == 0)
    def _init():
        acc_ref[...] = jnp.zeros_like(acc_ref)

    lhs = x_ref[...]
    rhs = w_ref[...]
    if lhs.dtype != rhs.dtype:
        lhs = lhs.astype(rhs.dtype)
    acc_ref[...] += jnp.dot(lhs, rhs, preferred_element_type=jnp.float32)

    @pl.when(k == pl.num_programs(2) - 1)
    def _finalize():
        y = acc_ref[...] + b_ref[...].astype(jnp.float32)
        y = jnp.maximum(y, 0.0) if activation == "relu" else jnp.tanh(y)
        o_ref[...] = y.astype(o_ref.dtype)


def mlp_forward(features, w_t, b_p, plan: _Plan, *, activation: str, n_out: int):
    """Hot path: pad activations if needed, run the tiled matmul + bias + act."""
    M, K = features.shape
    x_p = features
    if plan.Mp != M or plan.Kp != K:
        # Only the (small) activation gets padded per call; the weight was padded once.
        x_p = jnp.pad(features, ((0, plan.Mp - M), (0, plan.Kp - K)))

    grid = (plan.Mp // plan.tm, plan.Np // plan.tn, plan.Kp // plan.tk)

    cost = pl.CostEstimate(
        flops=2 * plan.Mp * plan.Np * plan.Kp,
        transcendentals=plan.Mp * plan.Np if activation == "tanh" else 0,
        bytes_accessed=(x_p.dtype.itemsize * plan.Mp * plan.Kp * grid[1]     # x re-read per N block
                        + w_t.dtype.itemsize * plan.Kp * plan.Np * grid[0]   # w re-read per M block
                        + 4 * plan.Np
                        + features.dtype.itemsize * plan.Mp * plan.Np),
    )

    kernel_fn = functools.partial(
        _mlp_kernel_scratch if plan.use_scratch else _mlp_kernel_inplace,
        activation=activation)
    scratch = ([pltpu.VMEM((plan.tm, plan.tn), jnp.float32)]
               if plan.use_scratch else [])

    out_p = pl.pallas_call(
        kernel_fn,
        out_shape=jax.ShapeDtypeStruct((plan.Mp, plan.Np), features.dtype),
        grid_spec=pltpu.PrefetchScalarGridSpec(
            num_scalar_prefetch=0,
            grid=grid,
            in_specs=[
                pl.BlockSpec((plan.tm, plan.tk), lambda i, j, k: (i, k)),  # activations
                # TODO(synk): sweep pipeline_mode=pl.Buffered(3) here if xprof shows exposed DMA.
                pl.BlockSpec((plan.tk, plan.tn), lambda i, j, k: (k, j)),  # weight (in, out)
                pl.BlockSpec((1, plan.tn), lambda i, j, k: (0, j)),        # bias
            ],
            out_specs=pl.BlockSpec((plan.tm, plan.tn), lambda i, j, k: (i, j)),
            scratch_shapes=scratch,
        ),
        compiler_params=pltpu.CompilerParams(
            dimension_semantics=("parallel", "parallel", "arbitrary"),
            vmem_limit_bytes=plan.vmem_limit,
        ),
        cost_estimate=cost,
    )(x_p, w_t, b_p)

    return out_p[:M, :n_out]


def mlp_layer(features, weight, bias, *, activation: str = "relu",
              weight_dtype=None, tm: Optional[int] = None,
              tn: Optional[int] = None, tk: Optional[int] = None):
    """features: (B, H); weight: (H_out, H_in) PyTorch nn.Linear layout; bias: (H_out,)."""
    if activation not in ("relu", "tanh"):
        raise ValueError(f"unsupported activation: {activation}")

    M, K = features.shape
    N, K_w = weight.shape
    assert K == K_w, "weight in-dim must match features"
    assert bias.shape == (N,)

    w_bytes = (jnp.dtype(weight_dtype).itemsize if weight_dtype is not None
               else weight.dtype.itemsize)
    plan = _make_plan(M, N, K,
                      x_bytes=features.dtype.itemsize,
                      w_bytes=w_bytes,
                      o_bytes=features.dtype.itemsize,
                      tm=tm, tn=tn, tk=tk)
    # In a real model: call prepare_mlp_params once at load time and cache (w_t, b_p).
    w_t, b_p = prepare_mlp_params(weight, bias, plan, weight_dtype=weight_dtype)
    return mlp_forward(features, w_t, b_p, plan, activation=activation, n_out=N)


if __name__ == "__main__":
    # config.hidden_size = 32, args.activation = 'relu'  (shipped MLPLayer config)
    B, H = 2, 32
    key = jax.random.PRNGKey(0)
    k_x, k_w, k_b = jax.random.split(key, 3)

    features = jax.random.normal(k_x, (B, H), dtype=jnp.float32)
    weight = jax.random.normal(k_w, (H, H), dtype=jnp.float32) * 0.05
    bias = jax.random.normal(k_b, (H,), dtype=jnp.float32) * 0.05

    out = jax.block_until_ready(mlp_layer(features, weight, bias, activation="relu"))
    ref = jnp.maximum(features @ weight.T + bias, 0.0)  # PyTorch nn.Linear + ReLU
    assert out.shape == (B, H)
    assert jnp.allclose(out, ref, atol=1e-5, rtol=1e-5)

    # Larger shape exercising a multi-block (N, K) grid with a real K reduction (tanh path).
    B2, H2 = 16, 384
    kx2, kw2, kb2 = jax.random.split(jax.random.PRNGKey(1), 3)
    x2 = jax.random.normal(kx2, (B2, H2), dtype=jnp.float32)
    w2 = jax.random.normal(kw2, (H2, H2), dtype=jnp.float32) * 0.02
    b2 = jax.random.normal(kb2, (H2,), dtype=jnp.float32) * 0.02
    out2 = jax.block_until_ready(
        mlp_layer(x2, w2, b2, activation="tanh", tn=128, tk=128))
    ref2 = jnp.tanh(x2 @ w2.T + b2)
    assert jnp.allclose(out2, ref2, atol=1e-4, rtol=1e-4)

    # bf16 weight streaming (halves weight HBM traffic; f32 MXU accumulation).
    out3 = jax.block_until_ready(
        mlp_layer(x2, w2, b2, activation="tanh", weight_dtype=jnp.bfloat16))
    assert jnp.allclose(out3, ref2, atol=3e-2, rtol=3e-2)

    print("KERNEL_OK")
</pallas_src>

<mosaic_0001>
module attributes {stable_mosaic.version = 11 : i64} {
  func.func @_mlp_kernel_inplace(%arg0: i32, %arg1: i32, %arg2: i32, %arg3: memref<8x128xf32, #tpu.memory_space<vmem>>, %arg4: memref<128x128xf32, #tpu.memory_space<vmem>>, %arg5: memref<1x128xf32, #tpu.memory_space<vmem>>, %arg6: memref<8x128xf32, #tpu.memory_space<vmem>>) attributes {dimension_semantics = [#tpu.dimension_semantics<parallel>, #tpu.dimension_semantics<parallel>, #tpu.dimension_semantics<arbitrary>], iteration_bounds = array<i64: 1, 1, 1>, scalar_prefetch = 0 : i64, scratch_operands = 0 : i64, tpu.core_type = #tpu.core_type<tc>, window_params = [{transform_indices = @transform_0, window_bounds = array<i64: 8, 128>}, {transform_indices = @transform_1, window_bounds = array<i64: 128, 128>}, {transform_indices = @transform_2, window_bounds = array<i64: 1, 128>}, {transform_indices = @transform_3, window_bounds = array<i64: 8, 128>}]} {
    %c0_i32 = arith.constant 0 : i32
    %0 = arith.cmpi eq, %arg2, %c0_i32 : i32
    %1 = arith.extui %0 : i1 to i32
    %c0_i32_0 = arith.constant 0 : i32
    %2 = arith.cmpi ne, %1, %c0_i32_0 : i32
    scf.if %2 {
      %cst_10 = arith.constant 0.000000e+00 : f32
      %12 = vector.broadcast %cst_10 : f32 to vector<8x128xf32>
      %c0_11 = arith.constant 0 : index
      %c0_12 = arith.constant 0 : index
      %13 = vector.load %arg6[%c0_11, %c0_12] : memref<8x128xf32, #tpu.memory_space<vmem>>, vector<8x128xf32>
      tpu.vector_store %arg6[%c0_11, %c0_12], %12 {strides = array<i32>} : memref<8x128xf32, #tpu.memory_space<vmem>>, vector<8x128xf32>,
    } else {
    }
    %c0 = arith.constant 0 : index
    %c0_1 = arith.constant 0 : index
    %3 = vector.load %arg3[%c0, %c0_1] : memref<8x128xf32, #tpu.memory_space<vmem>>, vector<8x128xf32>
    %c0_2 = arith.constant 0 : index
    %c0_3 = arith.constant 0 : index
    %4 = vector.load %arg4[%c0_2, %c0_3] : memref<128x128xf32, #tpu.memory_space<vmem>>, vector<128x128xf32>
    %c0_4 = arith.constant 0 : index
    %c0_5 = arith.constant 0 : index
    %5 = vector.load %arg6[%c0_4, %c0_5] : memref<8x128xf32, #tpu.memory_space<vmem>>, vector<8x128xf32>
    %cst = arith.constant dense<0.000000e+00> : vector<8x128xf32>
    %6 = tpu.matmul %3, %4, %cst {dimension_numbers = #tpu.dot_dimension_numbers<[1], [0], [0], [1], [0, 0, 1, 1], [], []>} : vector<8x128xf32>, vector<128x128xf32>, vector<8x128xf32> -> vector<8x128xf32>
    %7 = arith.addf %5, %6 : vector<8x128xf32>
    %c0_6 = arith.constant 0 : index
    %c0_7 = arith.constant 0 : index
    %8 = vector.load %arg6[%c0_6, %c0_7] : memref<8x128xf32, #tpu.memory_space<vmem>>, vector<8x128xf32>
    tpu.vector_store %arg6[%c0_6, %c0_7], %7 {strides = array<i32>} : memref<8x128xf32, #tpu.memory_space<vmem>>, vector<8x128xf32>,
    %c0_i32_8 = arith.constant 0 : i32
    %9 = arith.cmpi eq, %arg2, %c0_i32_8 : i32
    %10 = arith.extui %9 : i1 to i32
    %c0_i32_9 = arith.constant 0 : i32
    %11 = arith.cmpi ne, %10, %c0_i32_9 : i32
    scf.if %11 {
      %c0_10 = arith.constant 0 : index
      %c0_11 = arith.constant 0 : index
      %12 = vector.load %arg6[%c0_10, %c0_11] : memref<8x128xf32, #tpu.memory_space<vmem>>, vector<8x128xf32>
      %c0_12 = arith.constant 0 : index
      %c0_13 = arith.constant 0 : index
      %13 = vector.load %arg5[%c0_12, %c0_13] : memref<1x128xf32, #tpu.memory_space<vmem>>, vector<1x128xf32>
      %14 = vector.broadcast %13 : vector<1x128xf32> to vector<8x128xf32>
      %15 = arith.addf %12, %14 : vector<8x128xf32>
      %cst_14 = arith.constant 0.000000e+00 : f32
      %16 = vector.broadcast %cst_14 : f32 to vector<8x128xf32>
      %17 = arith.maximumf %15, %16 : vector<8x128xf32>
      %c0_15 = arith.constant 0 : index
      %c0_16 = arith.constant 0 : index
      %18 = vector.load %arg6[%c0_15, %c0_16] : memref<8x128xf32, #tpu.memory_space<vmem>>, vector<8x128xf32>
      tpu.vector_store %arg6[%c0_15, %c0_16], %17 {strides = array<i32>} : memref<8x128xf32, #tpu.memory_space<vmem>>, vector<8x128xf32>,
    } else {
    }
    return
  }
  func.func @transform_0(%arg0: i32, %arg1: i32, %arg2: i32) -> (i32, i32) {
    %c0_i32 = arith.constant 0 : i32
    return %arg0, %arg2 : i32, i32
  }
  func.func @transform_1(%arg0: i32, %arg1: i32, %arg2: i32) -> (i32, i32) {
    %c0_i32 = arith.constant 0 : i32
    return %arg2, %arg1 : i32, i32
  }
  func.func @transform_2(%arg0: i32, %arg1: i32, %arg2: i32) -> (i32, i32) {
    %c0_i32 = arith.constant 0 : i32
    %c0_i32_0 = arith.constant 0 : i32
    return %c0_i32, %arg1 : i32, i32
  }
  func.func @transform_3(%arg0: i32, %arg1: i32, %arg2: i32) -> (i32, i32) {
    %c0_i32 = arith.constant 0 : i32
    return %arg0, %arg1 : i32, i32
  }
}

</mosaic_0001>

<llo_original>
// kernel: tpu_custom_call.1
$region0: #{tpu_custom_call.1}
  #allocation0 [shape = 'u32[]', space=smem, size = 0x4, offset = 0x4, fixed_abs, tag = 'smem constant byte address 0x4 - core index']
  #allocation1 [shape = 'u32[144,128]{1,0:T(1,128)}', space=vmem, size = 0x12000, scoped, tag = 'internal scratch']
  %s0 = inlined_call_operand.hbm [shape: f32[8,128], index: 0, kind: input, shape index: {}]
  %s1 = inlined_call_operand.hbm [shape: f32[128,128], index: 1, kind: input, shape index: {}]
  %s2 = inlined_call_operand.vmem [shape: f32[1,128], index: 2, kind: input, shape index: {}]
  %s3 = inlined_call_operand.hbm [shape: f32[8,128], index: 3, kind: output, shape index: {}]
  %s4 = sld [smem:[#allocation0]]
  $region38: #{tpu_custom_call.1} parent=0
    _
  %s6 = ssub.s32 1, %s4
  %s7 = scalar_select 0, %s6, %s4
  $region1: #{tpu_custom_call.1} parent=0
    #allocation2 [shape = 'u8[4096]{0}', space=vmem, size = 0x1000, scoped, tag = 'input window, operand 0, single buffered']
    #allocation3 [shape = 's32[1]{0}', space=sflag, size = 0x4, scoped, tag = 'scoped memory for tpu_custom_call.1']
    #allocation4 [shape = 's32[1]{0}', space=sflag, size = 0x4, scoped, tag = 'scoped memory for tpu_custom_call.1']
    #allocation5 [shape = 'u8[65536]{0}', space=vmem, size = 0x10000, scoped, tag = 'input window, operand 1, single buffered']
    #allocation6 [shape = 's32[1]{0}', space=sflag, size = 0x4, scoped, tag = 'scoped memory for tpu_custom_call.1']
    #allocation7 [shape = 'u8[4096]{0}', space=vmem, size = 0x1000, scoped, tag = 'output window, operand 0, single buffered']
    %8 = vsyncpa [#allocation3], 0
    %9 = vsyncpa [#allocation6], 0
    %10 = vsyncpa [#allocation4], 0
    // Predicated region
    $region2: #{tpu_custom_call.1} parent=1 // pred_check
      _
    $region3: #{tpu_custom_call.1} parent=1 // pred_check_branch
      %12 = sbr.rel (0) target = $region5
    $region4: #{tpu_custom_call.1} parent=1 // pred_region
      %s14 = ssub.s32 128, 128
      %15 = vsyncadd [#allocation3], %s14
      %s17 = sshll.u32 [#allocation2], 4
      %s18 = int_to_ptr.vmem [resolvable:$true] %s17
      %20 = dma.hbm_to_vmem [thread:$0]  %s0, 128, %s18, [#allocation3]
    $region5: #{tpu_custom_call.1} parent=1 // pred_fallthru
      _
    // Predicated region
    $region6: #{tpu_custom_call.1} parent=1 // pred_check
      _
    $region7: #{tpu_custom_call.1} parent=1 // pred_check_branch
      %22 = sbr.rel (0) target = $region9
    $region8: #{tpu_custom_call.1} parent=1 // pred_region
      %s24 = ssub.s32 2048, 2048
      %25 = vsyncadd [#allocation6], %s24
      %s26 = sshll.u32 [#allocation5], 4
      %s27 = int_to_ptr.vmem [resolvable:$true] %s26
      %32 = dma.hbm_to_vmem [thread:$0]  %s1, 2048, %s27, [#allocation6], 128, 128, 8
    $region9: #{tpu_custom_call.1} parent=1 // pred_fallthru
      _
    // Predicated region
    $region10: #{tpu_custom_call.1} parent=1 // pred_check
      _
    $region11: #{tpu_custom_call.1} parent=1 // pred_check_branch
      %34 = sbr.rel (0) target = $region13
    $region12: #{tpu_custom_call.1} parent=1 // pred_region
      _
    $region13: #{tpu_custom_call.1} parent=1 // pred_fallthru
      _
    // Predicated region
    $region14: #{tpu_custom_call.1} parent=1 // pred_check
      _
    $region15: #{tpu_custom_call.1} parent=1 // pred_check_branch
      %36 = sbr.rel (0) target = $region17
    $region16: #{tpu_custom_call.1} parent=1 // pred_region
      %37 = dma.done [#allocation3], 128
    $region17: #{tpu_custom_call.1} parent=1 // pred_fallthru
      _
    // Predicated region
    $region18: #{tpu_custom_call.1} parent=1 // pred_check
      _
    $region19: #{tpu_custom_call.1} parent=1 // pred_check_branch
      %39 = sbr.rel (0) target = $region21
    $region20: #{tpu_custom_call.1} parent=1 // pred_region
      %40 = dma.done [#allocation6], 2048
    $region21: #{tpu_custom_call.1} parent=1 // pred_fallthru
      _
    %p41 = scmp.eq.s32.totalorder 0, 0
    // Predicated region
    $region22: #{tpu_custom_call.1} parent=1 // pred_check
      %p42 = pneg %p41
    $region23: #{tpu_custom_call.1} parent=1 // pred_check_branch
      %44 = sbr.rel (%p42) target = $region25
    $region24: #{tpu_custom_call.1} parent=1 // pred_region
      %45 = vst [vmem:[#allocation7] sm:$0xff] 0.0
    $region25: #{tpu_custom_call.1} parent=1 // pred_fallthru
      _
    %v46 = vld [vmem:[#allocation2] sm:$0xff]
    %v47 = vld [vmem:[#allocation5] sm:$0xff]
    %v48 = vld [vmem:[#allocation5 + $0x8] sm:$0xff]
    %v49 = vld [vmem:[#allocation5 + $0x10] sm:$0xff]
    %v50 = vld [vmem:[#allocation5 + $0x18] sm:$0xff]
    %v51 = vld [vmem:[#allocation5 + $0x20] sm:$0xff]
    %v52 = vld [vmem:[#allocation5 + $0x28] sm:$0xff]
    %v53 = vld [vmem:[#allocation5 + $0x30] sm:$0xff]
    %v54 = vld [vmem:[#allocation5 + $0x38] sm:$0xff]
    %v55 = vld [vmem:[#allocation5 + $0x40] sm:$0xff]
    %v56 = vld [vmem:[#allocation5 + $0x48] sm:$0xff]
    %v57 = vld [vmem:[#allocation5 + $0x50] sm:$0xff]
    %v58 = vld [vmem:[#allocation5 + $0x58] sm:$0xff]
    %v59 = vld [vmem:[#allocation5 + $0x60] sm:$0xff]
    %v60 = vld [vmem:[#allocation5 + $0x68] sm:$0xff]
    %v61 = vld [vmem:[#allocation5 + $0x70] sm:$0xff]
    %v62 = vld [vmem:[#allocation5 + $0x78] sm:$0xff]
    %v63 = vld [vmem:[#allocation7] sm:$0xff]
    %64 = vmatprep.subr.mxu0 0.0
    %65 = vmatpush1.msra.mxu0 %v47
    %66 = vmatprep.subr.mxu0 0.0
    %67 = vmatpush1.msra.mxu0 %v48
    %68 = vmatprep.subr.mxu0 0.0
    %69 = vmatpush1.msra.mxu0 %v49
    %70 = vmatprep.subr.mxu0 0.0
    %71 = vmatpush1.msra.mxu0 %v50
    %72 = vmatprep.subr.mxu0 0.0
    %73 = vmatpush1.msra.mxu0 %v51
    %74 = vmatprep.subr.mxu0 0.0
    %75 = vmatpush1.msra.mxu0 %v52
    %76 = vmatprep.subr.mxu0 0.0
    %77 = vmatpush1.msra.mxu0 %v53
    %78 = vmatprep.subr.mxu0 0.0
    %79 = vmatpush1.msra.mxu0 %v54
    %80 = vmatprep.subr.mxu0 0.0
    %81 = vmatpush1.msra.mxu0 %v55
    %82 = vmatprep.subr.mxu0 0.0
    %83 = vmatpush1.msra.mxu0 %v56
    %84 = vmatprep.subr.mxu0 0.0
    %85 = vmatpush1.msra.mxu0 %v57
    %86 = vmatprep.subr.mxu0 0.0
    %87 = vmatpush1.msra.mxu0 %v58
    %88 = vmatprep.subr.mxu0 0.0
    %89 = vmatpush1.msra.mxu0 %v59
    %90 = vmatprep.subr.mxu0 0.0
    %91 = vmatpush1.msra.mxu0 %v60
    %92 = vmatprep.subr.mxu0 0.0
    %93 = vmatpush1.msra.mxu0 %v61
    %94 = vmatprep.subr.mxu0 0.0
    %95 = vmatpush1.msra.mxu0 %v62
    %96 = vmatprep.subr.mxu0 0.0
    %97 = vmatpush1.msra.mxu0 0.0
    %98 = vmatprep.subr.mxu0 0.0
    %99 = vmatpush1.msra.mxu0 0.0
    %100 = vmatprep.subr.mxu0 0.0
    %101 = vmatpush1.msra.mxu0 0.0
    %102 = vmatprep.subr.mxu0 0.0
    %103 = vmatpush1.msra.mxu0 0.0
    %104 = vmatprep.subr.mxu0 0.0
    %105 = vmatpush1.msra.mxu0 0.0
    %106 = vmatprep.subr.mxu0 0.0
    %107 = vmatpush1.msra.mxu0 0.0
    %108 = vmatprep.subr.mxu0 0.0
    %109 = vmatpush1.msra.mxu0 0.0
    %110 = vmatprep.subr.mxu0 0.0
    %111 = vmatpush1.msra.mxu0 0.0
    %112 = vmatprep.subr.mxu0 0.0
    %113 = vmatpush1.msra.mxu0 0.0
    %114 = vmatprep.subr.mxu0 0.0
    %115 = vmatpush1.msra.mxu0 0.0
    %116 = vmatprep.subr.mxu0 0.0
    %117 = vmatpush1.msra.mxu0 0.0
    %118 = vmatprep.subr.mxu0 0.0
    %119 = vmatpush1.msra.mxu0 0.0
    %120 = vmatprep.subr.mxu0 0.0
    %121 = vmatpush1.msra.mxu0 0.0
    %122 = vmatprep.subr.mxu0 0.0
    %123 = vmatpush1.msra.mxu0 0.0
    %124 = vmatprep.subr.mxu0 0.0
    %125 = vmatpush1.msra.mxu0 0.0
    %126 = vmatprep.subr.mxu0 0.0
    %127 = vmatpush1.msra.mxu0 0.0
    %128 = vmatprep.mubr.f32.mxu0 0.0
    %129 = vmatmul.mubr.f32.gmra.mrb[0].mxu0 %v46
    %v130 = vpop.f32.mrb[0].mxu0
    %v131 = vadd.f32 0.0, %v130
    %v132 = vpop.f32.mrb[0].mxu0
    %133 = vdwg.mxu0
    %v134 = vadd.f32 %v63, %v131
    %135 = vst [vmem:[#allocation7] sm:$0xff] %v134
    // Predicated region
    $region26: #{tpu_custom_call.1} parent=1 // pred_check
      %p136 = pneg %p41
    $region27: #{tpu_custom_call.1} parent=1 // pred_check_branch
      %138 = sbr.rel (%p136) target = $region29
    $region28: #{tpu_custom_call.1} parent=1 // pred_region
      %v139 = vld [vmem:[#allocation7] sm:$0xff]
      %v140 = vld [vmem:[%s2] sm:$0x1]
      %v142 = vlaneseq
      %v143 = vshrl.u32 %v142, 7
      %v144 = vsub.s32 0, %v143
      %v145 = vrot.slane %v140, %v144
      %v147 = vadd.f32 %v139, %v145
      %v148 = vmax.f32 %v147, 0.0
      %149 = vst [vmem:[#allocation7] sm:$0xff] %v148
    $region29: #{tpu_custom_call.1} parent=1 // pred_fallthru
      _
    // Predicated region
    $region30: #{tpu_custom_call.1} parent=1 // pred_check
      _
    $region31: #{tpu_custom_call.1} parent=1 // pred_check_branch
      %151 = sbr.rel (0) target = $region33
    $region32: #{tpu_custom_call.1} parent=1 // pred_region
      %s153 = ssub.s32 128, 128
      %154 = vsyncadd [#allocation4], %s153
      %s156 = sshll.u32 [#allocation7], 4
      %s157 = int_to_ptr.vmem [resolvable:$true] %s156
      %159 = dma.vmem_to_hbm [thread:$0]  %s157, 128, %s3, [#allocation4]
    $region33: #{tpu_custom_call.1} parent=1 // pred_fallthru
      _
    // Predicated region
    $region34: #{tpu_custom_call.1} parent=1 // pred_check
      _
    $region35: #{tpu_custom_call.1} parent=1 // pred_check_branch
      %161 = sbr.rel (0) target = $region37
    $region36: #{tpu_custom_call.1} parent=1 // pred_region
      %162 = dma.done [#allocation4], 128
    $region37: #{tpu_custom_call.1} parent=1 // pred_fallthru
      _
    %163 = vsyncpa [#allocation3], 1
    %164 = vsyncpa [#allocation6], 1
    %165 = vsyncpa [#allocation4], 1

</llo_original>
